<compile_context>
chip_gen: v7x
topology: tpu7x:2x2x1
jax: 0.10.0
libtpu: 0.0.40
codegen_flags: <defaults>
</compile_context>

<pallas_src>
import math

import jax
import jax.numpy as jnp
from jax import lax
from jax.experimental import pallas as pl
from jax.experimental.pallas import tpu as pltpu


def _policy_kernel(x_ref,
                   w1_ref, b1_ref,
                   w2_ref, b2_ref,
                   w3_ref, b3_ref,
                   w4_ref, b4_ref,
                   o_ref):
    """Fused 4-layer MLP.

    The x tile arrives batch-major (TILE_B, 10); fc1 contracts over the
    feature axis of both operands, so every subsequent activation is
    feature-major (features, TILE_B): batch sits on the 128-wide lane axis
    and the final (9, TILE_B) store is lane-dense.
    """
    x = x_ref[...].astype(jnp.bfloat16)                           # (TB, 10)

    # fc1: (256, 10) . (TB, 10) contracted over dim 1 of both -> (256, TB).
    h = lax.dot_general(w1_ref[...], x, (((1,), (1,)), ((), ())),
                        preferred_element_type=jnp.float32)
    h = jnp.maximum(h + b1_ref[...], 0.0).astype(jnp.bfloat16)    # (256, TB) bf16

    # fc2
    h = jnp.dot(w2_ref[...], h, preferred_element_type=jnp.float32)
    h = jnp.maximum(h + b2_ref[...], 0.0).astype(jnp.bfloat16)    # (64, TB) bf16

    # fc3
    h = jnp.dot(w3_ref[...], h, preferred_element_type=jnp.float32)
    h = jnp.maximum(h + b3_ref[...], 0.0).astype(jnp.bfloat16)    # (32, TB) bf16

    # fc4 (logits, no activation) — lane-dense f32 store.
    o_ref[...] = (jnp.dot(w4_ref[...], h, preferred_element_type=jnp.float32)
                  + b4_ref[...])                                  # (9, TB)


def _round_up(n, m):
    return ((n + m - 1) // m) * m


def _choose_tile(batch, tile_b):
    """Batch tile: multiple of 128, capped so the grid has >=2 steps (v7x)."""
    tile_b = _round_up(max(tile_b, 128), 128)
    bp0 = _round_up(batch, 128)
    if bp0 >= 256:
        # Cap the tile at half the padded batch so megacore always has >= 2
        # "parallel" grid steps to split across its two TensorCores.
        tile = min(tile_b, _round_up((bp0 + 1) // 2, 128))
    else:
        tile = min(tile_b, bp0)
    bp = _round_up(batch, tile)
    return tile, bp


def _dense_forward(x, params):
    """Pure-JAX path, same bf16-weight / f32-accumulate math as the kernel.

    Used both as the correctness reference and as the small-batch fast path:
    at MCTS-sized batches (a handful of boards) the XLA-fused dense chain
    beats a Pallas launch + pad/slice overhead.
    """
    h = x.astype(jnp.bfloat16)
    for name in ("fc1", "fc2", "fc3"):
        w, b = params[name]
        h = jnp.dot(h, w.T, preferred_element_type=jnp.float32) + b[:, 0]
        h = jnp.maximum(h, 0.0).astype(jnp.bfloat16)
    w, b = params["fc4"]
    return jnp.dot(h, w.T, preferred_element_type=jnp.float32) + b[:, 0]


def policy_forward(x, params, *, tile_b=4096, min_pallas_batch=256,
                   force_pallas=False):
    """x: (B, 10) float32. Returns (B, 9) float32 logits."""
    B = x.shape[0]
    assert x.shape[1] == 10

    # Small-batch fast path: launch overhead dominates below ~256 rows.
    if not force_pallas and B < min_pallas_batch:
        return _dense_forward(x, params)

    (w1, b1), (w2, b2), (w3, b3), (w4, b4) = (
        params["fc1"], params["fc2"], params["fc3"], params["fc4"])

    tile, Bp = _choose_tile(B, tile_b)

    if Bp != B:
        # Single fused wrapper pass: pad batch to a tile multiple and cast to
        # bf16 (halves the x-tile DMA bytes).  Padding columns compute
        # bias-only logits that are sliced off below.
        xp = jnp.pad(x.astype(jnp.bfloat16), ((0, Bp - B), (0, 0)))
    else:
        xp = x   # no wrapper pass at all; kernel casts to bf16 on the fly.

    def resident(a):
        # Full-array block with a constant index_map -> stays VMEM-resident
        # (not re-fetched) across batch grid steps.
        return pl.BlockSpec(a.shape, lambda i: (0, 0))

    weight_bytes = sum(int(a.size) * a.dtype.itemsize
                       for a in (w1, b1, w2, b2, w3, b3, w4, b4))

    out = pl.pallas_call(
        _policy_kernel,
        out_shape=jax.ShapeDtypeStruct((9, Bp), jnp.float32),
        grid_spec=pltpu.PrefetchScalarGridSpec(
            num_scalar_prefetch=0,
            grid=(Bp // tile,),
            in_specs=[
                pl.BlockSpec((tile, 10), lambda i: (i, 0)),    # x tile (batch-major)
                resident(w1), resident(b1),
                resident(w2), resident(b2),
                resident(w3), resident(b3),
                resident(w4), resident(b4),
            ],
            out_specs=pl.BlockSpec((9, tile), lambda i: (0, i)),
        ),
        compiler_params=pltpu.CompilerParams(
            dimension_semantics=("parallel",),       # v7x: 2 TCs split the batch grid
            vmem_limit_bytes=48 * 1024 * 1024,       # headroom for tile=4096 intermediates
        ),
        cost_estimate=pl.CostEstimate(
            flops=2 * Bp * (10 * 256 + 256 * 64 + 64 * 32 + 32 * 9),
            transcendentals=0,
            bytes_accessed=(Bp * 10 * xp.dtype.itemsize
                            + Bp * 9 * 4 + weight_bytes),
        ),
    )(xp, w1, b1, w2, b2, w3, b3, w4, b4)

    # Tiny (9, B) slice+transpose back to the PyTorch-facing (B, 9) layout.
    return out[:, :B].T


def init_params(key):
    """PyTorch-style init, stored feature-major and zero-padded.

    Weights keep the native (out, in) orientation, zero-padded to
    MXU/sublane-friendly sizes (250->256, 50->64, 25->32); weights bf16,
    biases f32 with shape (out, 1) for lane broadcasting.  Zero padding is
    mathematically inert.
    """
    # (name, fan_in, fan_out, padded_in, padded_out)
    specs = [
        ("fc1", 10, 250, 10, 256),
        ("fc2", 250, 50, 256, 64),
        ("fc3", 50, 25, 64, 32),
        ("fc4", 25, 9, 32, 9),
    ]
    params = {}
    for name, fan_in, fan_out, in_p, out_p in specs:
        key, kw, kb = jax.random.split(key, 3)
        bound = 1.0 / math.sqrt(fan_in)   # PyTorch default U(-1/sqrt(in), 1/sqrt(in))
        w = jax.random.uniform(kw, (fan_out, fan_in), jnp.float32, -bound, bound)
        b = jax.random.uniform(kb, (fan_out,), jnp.float32, -bound, bound)
        w_p = jnp.zeros((out_p, in_p), jnp.float32).at[:fan_out, :fan_in].set(w)
        b_p = jnp.zeros((out_p, 1), jnp.float32).at[:fan_out, 0].set(b)
        params[name] = (w_p.astype(jnp.bfloat16), b_p)
    return params


if __name__ == "__main__":
    key = jax.random.PRNGKey(0)
    key, kp, kx1, kx2, kx3 = jax.random.split(key, 5)
    params = init_params(kp)

    # 1) Tiny MCTS-style batch: default path takes the pure-JAX fast path.
    x_small = jax.random.normal(kx1, (4, 10), jnp.float32)
    out_small = jax.block_until_ready(policy_forward(x_small, params))
    assert out_small.shape == (4, 9)
    assert jnp.allclose(out_small, _dense_forward(x_small, params),
                        atol=2e-2, rtol=2e-2)

    # 2) Same tiny batch forced through the Pallas kernel (1 grid step).
    out_small_k = jax.block_until_ready(
        policy_forward(x_small, params, force_pallas=True))
    assert out_small_k.shape == (4, 9)
    assert jnp.allclose(out_small_k, _dense_forward(x_small, params),
                        atol=2e-2, rtol=2e-2)

    # 3) Non-multiple-of-128 batch with a small tile -> 3-step batch grid.
    x_mid = jax.random.normal(kx2, (300, 10), jnp.float32)
    out_mid = jax.block_until_ready(policy_forward(x_mid, params, tile_b=128))
    assert out_mid.shape == (300, 9)
    assert jnp.allclose(out_mid, _dense_forward(x_mid, params),
                        atol=2e-2, rtol=2e-2)

    # 4) Batch where the auto tile splits into 2 grid steps (v7x megacore).
    x_big = jax.random.normal(kx3, (512, 10), jnp.float32)
    out_big = jax.block_until_ready(policy_forward(x_big, params))
    assert out_big.shape == (512, 9)
    assert jnp.allclose(out_big, _dense_forward(x_big, params),
                        atol=2e-2, rtol=2e-2)

    print("KERNEL_OK")
</pallas_src>

<mosaic_0001>
module attributes {stable_mosaic.version = 11 : i64} {
  func.func @_policy_kernel(%arg0: i32, %arg1: memref<128x10xbf16, #tpu.memory_space<vmem>>, %arg2: memref<256x10xbf16, #tpu.memory_space<vmem>>, %arg3: memref<256x1xf32, #tpu.memory_space<vmem>>, %arg4: memref<64x256xbf16, #tpu.memory_space<vmem>>, %arg5: memref<64x1xf32, #tpu.memory_space<vmem>>, %arg6: memref<32x64xbf16, #tpu.memory_space<vmem>>, %arg7: memref<32x1xf32, #tpu.memory_space<vmem>>, %arg8: memref<9x32xbf16, #tpu.memory_space<vmem>>, %arg9: memref<9x1xf32, #tpu.memory_space<vmem>>, %arg10: memref<9x128xf32, #tpu.memory_space<vmem>>) attributes {dimension_semantics = [#tpu.dimension_semantics<parallel>], iteration_bounds = array<i64: 1>, scalar_prefetch = 0 : i64, scratch_operands = 0 : i64, tpu.core_type = #tpu.core_type<tc>, window_params = [{transform_indices = @transform_0, window_bounds = array<i64: 128, 10>}, {pipeline_mode = #tpu.pipeline_mode<synchronous>, transform_indices = @transform_1, window_bounds = array<i64: 256, 10>}, {pipeline_mode = #tpu.pipeline_mode<synchronous>, transform_indices = @transform_2, window_bounds = array<i64: 256, 1>}, {pipeline_mode = #tpu.pipeline_mode<synchronous>, transform_indices = @transform_3, window_bounds = array<i64: 64, 256>}, {pipeline_mode = #tpu.pipeline_mode<synchronous>, transform_indices = @transform_4, window_bounds = array<i64: 64, 1>}, {pipeline_mode = #tpu.pipeline_mode<synchronous>, transform_indices = @transform_5, window_bounds = array<i64: 32, 64>}, {pipeline_mode = #tpu.pipeline_mode<synchronous>, transform_indices = @transform_6, window_bounds = array<i64: 32, 1>}, {pipeline_mode = #tpu.pipeline_mode<synchronous>, transform_indices = @transform_7, window_bounds = array<i64: 9, 32>}, {pipeline_mode = #tpu.pipeline_mode<synchronous>, transform_indices = @transform_8, window_bounds = array<i64: 9, 1>}, {transform_indices = @transform_9, window_bounds = array<i64: 9, 128>}]} {
    %c0 = arith.constant 0 : index
    %c0_0 = arith.constant 0 : index
    %0 = vector.load %arg1[%c0, %c0_0] : memref<128x10xbf16, #tpu.memory_space<vmem>>, vector<128x10xbf16>
    %c0_1 = arith.constant 0 : index
    %c0_2 = arith.constant 0 : index
    %1 = vector.load %arg2[%c0_1, %c0_2] : memref<256x10xbf16, #tpu.memory_space<vmem>>, vector<256x10xbf16>
    %cst = arith.constant dense<0.000000e+00> : vector<256x128xf32>
    %2 = tpu.matmul %1, %0, %cst {dimension_numbers = #tpu.dot_dimension_numbers<[1], [1], [0], [0], [0, 0, 1, 0], [], []>} : vector<256x10xbf16>, vector<128x10xbf16>, vector<256x128xf32> -> vector<256x128xf32>
    %c0_3 = arith.constant 0 : index
    %c0_4 = arith.constant 0 : index
    %3 = vector.load %arg3[%c0_3, %c0_4] : memref<256x1xf32, #tpu.memory_space<vmem>>, vector<256x1xf32>
    %4 = vector.broadcast %3 : vector<256x1xf32> to vector<256x128xf32>
    %5 = arith.addf %2, %4 : vector<256x128xf32>
    %cst_5 = arith.constant 0.000000e+00 : f32
    %6 = vector.broadcast %cst_5 : f32 to vector<256x128xf32>
    %7 = arith.maximumf %5, %6 : vector<256x128xf32>
    %8 = arith.truncf %7 : vector<256x128xf32> to vector<256x128xbf16>
    %c0_6 = arith.constant 0 : index
    %c0_7 = arith.constant 0 : index
    %9 = vector.load %arg4[%c0_6, %c0_7] : memref<64x256xbf16, #tpu.memory_space<vmem>>, vector<64x256xbf16>
    %cst_8 = arith.constant dense<0.000000e+00> : vector<64x128xf32>
    %10 = tpu.matmul %9, %8, %cst_8 {dimension_numbers = #tpu.dot_dimension_numbers<[1], [0], [0], [1], [0, 0, 1, 1], [], []>} : vector<64x256xbf16>, vector<256x128xbf16>, vector<64x128xf32> -> vector<64x128xf32>
    %c0_9 = arith.constant 0 : index
    %c0_10 = arith.constant 0 : index
    %11 = vector.load %arg5[%c0_9, %c0_10] : memref<64x1xf32, #tpu.memory_space<vmem>>, vector<64x1xf32>
    %12 = vector.broadcast %11 : vector<64x1xf32> to vector<64x128xf32>
    %13 = arith.addf %10, %12 : vector<64x128xf32>
    %cst_11 = arith.constant 0.000000e+00 : f32
    %14 = vector.broadcast %cst_11 : f32 to vector<64x128xf32>
    %15 = arith.maximumf %13, %14 : vector<64x128xf32>
    %16 = arith.truncf %15 : vector<64x128xf32> to vector<64x128xbf16>
    %c0_12 = arith.constant 0 : index
    %c0_13 = arith.constant 0 : index
    %17 = vector.load %arg6[%c0_12, %c0_13] : memref<32x64xbf16, #tpu.memory_space<vmem>>, vector<32x64xbf16>
    %cst_14 = arith.constant dense<0.000000e+00> : vector<32x128xf32>
    %18 = tpu.matmul %17, %16, %cst_14 {dimension_numbers = #tpu.dot_dimension_numbers<[1], [0], [0], [1], [0, 0, 1, 1], [], []>} : vector<32x64xbf16>, vector<64x128xbf16>, vector<32x128xf32> -> vector<32x128xf32>
    %c0_15 = arith.constant 0 : index
    %c0_16 = arith.constant 0 : index
    %19 = vector.load %arg7[%c0_15, %c0_16] : memref<32x1xf32, #tpu.memory_space<vmem>>, vector<32x1xf32>
    %20 = vector.broadcast %19 : vector<32x1xf32> to vector<32x128xf32>
    %21 = arith.addf %18, %20 : vector<32x128xf32>
    %cst_17 = arith.constant 0.000000e+00 : f32
    %22 = vector.broadcast %cst_17 : f32 to vector<32x128xf32>
    %23 = arith.maximumf %21, %22 : vector<32x128xf32>
    %24 = arith.truncf %23 : vector<32x128xf32> to vector<32x128xbf16>
    %c0_18 = arith.constant 0 : index
    %c0_19 = arith.constant 0 : index
    %25 = vector.load %arg8[%c0_18, %c0_19] : memref<9x32xbf16, #tpu.memory_space<vmem>>, vector<9x32xbf16>
    %cst_20 = arith.constant dense<0.000000e+00> : vector<9x128xf32>
    %26 = tpu.matmul %25, %24, %cst_20 {dimension_numbers = #tpu.dot_dimension_numbers<[1], [0], [0], [1], [0, 0, 1, 1], [], []>} : vector<9x32xbf16>, vector<32x128xbf16>, vector<9x128xf32> -> vector<9x128xf32>
    %c0_21 = arith.constant 0 : index
    %c0_22 = arith.constant 0 : index
    %27 = vector.load %arg9[%c0_21, %c0_22] : memref<9x1xf32, #tpu.memory_space<vmem>>, vector<9x1xf32>
    %28 = vector.broadcast %27 : vector<9x1xf32> to vector<9x128xf32>
    %29 = arith.addf %26, %28 : vector<9x128xf32>
    %c0_23 = arith.constant 0 : index
    %c0_24 = arith.constant 0 : index
    %30 = vector.load %arg10[%c0_23, %c0_24] : memref<9x128xf32, #tpu.memory_space<vmem>>, vector<9x128xf32>
    tpu.vector_store %arg10[%c0_23, %c0_24], %29 {strides = array<i32>} : memref<9x128xf32, #tpu.memory_space<vmem>>, vector<9x128xf32>,
    return
  }
  func.func @transform_0(%arg0: i32) -> (i32, i32) {
    %c0_i32 = arith.constant 0 : i32
    %c0_i32_0 = arith.constant 0 : i32
    return %arg0, %c0_i32 : i32, i32
  }
  func.func @transform_1(%arg0: i32) -> (i32, i32) {
    %c0_i32 = arith.constant 0 : i32
    %c0_i32_0 = arith.constant 0 : i32
    %c0_i32_1 = arith.constant 0 : i32
    return %c0_i32, %c0_i32_0 : i32, i32
  }
  func.func @transform_2(%arg0: i32) -> (i32, i32) {
    %c0_i32 = arith.constant 0 : i32
    %c0_i32_0 = arith.constant 0 : i32
    %c0_i32_1 = arith.constant 0 : i32
    return %c0_i32, %c0_i32_0 : i32, i32
  }
  func.func @transform_3(%arg0: i32) -> (i32, i32) {
    %c0_i32 = arith.constant 0 : i32
    %c0_i32_0 = arith.constant 0 : i32
    %c0_i32_1 = arith.constant 0 : i32
    return %c0_i32, %c0_i32_0 : i32, i32
  }
  func.func @transform_4(%arg0: i32) -> (i32, i32) {
    %c0_i32 = arith.constant 0 : i32
    %c0_i32_0 = arith.constant 0 : i32
    %c0_i32_1 = arith.constant 0 : i32
    return %c0_i32, %c0_i32_0 : i32, i32
  }
  func.func @transform_5(%arg0: i32) -> (i32, i32) {
    %c0_i32 = arith.constant 0 : i32
    %c0_i32_0 = arith.constant 0 : i32
    %c0_i32_1 = arith.constant 0 : i32
    return %c0_i32, %c0_i32_0 : i32, i32
  }
  func.func @transform_6(%arg0: i32) -> (i32, i32) {
    %c0_i32 = arith.constant 0 : i32
    %c0_i32_0 = arith.constant 0 : i32
    %c0_i32_1 = arith.constant 0 : i32
    return %c0_i32, %c0_i32_0 : i32, i32
  }
  func.func @transform_7(%arg0: i32) -> (i32, i32) {
    %c0_i32 = arith.constant 0 : i32
    %c0_i32_0 = arith.constant 0 : i32
    %c0_i32_1 = arith.constant 0 : i32
    return %c0_i32, %c0_i32_0 : i32, i32
  }
  func.func @transform_8(%arg0: i32) -> (i32, i32) {
    %c0_i32 = arith.constant 0 : i32
    %c0_i32_0 = arith.constant 0 : i32
    %c0_i32_1 = arith.constant 0 : i32
    return %c0_i32, %c0_i32_0 : i32, i32
  }
  func.func @transform_9(%arg0: i32) -> (i32, i32) {
    %c0_i32 = arith.constant 0 : i32
    %c0_i32_0 = arith.constant 0 : i32
    return %c0_i32, %arg0 : i32, i32
  }
}

</mosaic_0001>

<llo_original>
// kernel: tpu_custom_call.1
$region0: #{tpu_custom_call.1}
  #allocation0 [shape = 'u32[]', space=smem, size = 0x4, offset = 0x4, fixed_abs, tag = 'smem constant byte address 0x4 - core index']
  #allocation1 [shape = 'u32[144,128]{1,0:T(1,128)}', space=vmem, size = 0x12000, scoped, tag = 'internal scratch']
  %s0 = inlined_call_operand.vmem [shape: bf16[128,10], index: 0, kind: input, shape index: {}]
  %s1 = inlined_call_operand.vmem [shape: bf16[256,10], index: 1, kind: input, shape index: {}]
  %s2 = inlined_call_operand.vmem [shape: f32[256,1], index: 2, kind: input, shape index: {}]
  %s3 = inlined_call_operand.vmem [shape: bf16[64,256], index: 3, kind: input, shape index: {}]
  %s4 = inlined_call_operand.vmem [shape: f32[64,1], index: 4, kind: input, shape index: {}]
  %s5 = inlined_call_operand.vmem [shape: bf16[32,64], index: 5, kind: input, shape index: {}]
  %s6 = inlined_call_operand.vmem [shape: f32[32,1], index: 6, kind: input, shape index: {}]
  %s7 = inlined_call_operand.vmem [shape: bf16[9,32], index: 7, kind: input, shape index: {}]
  %s8 = inlined_call_operand.vmem [shape: f32[9,1], index: 8, kind: input, shape index: {}]
  %s9 = inlined_call_operand.hbm [shape: f32[9,128], index: 9, kind: output, shape index: {}]
  %s10 = sld [smem:[#allocation0]]
  $region46: #{tpu_custom_call.1} parent=0
    _
  %s12 = ssub.s32 1, %s10
  %s13 = scalar_select 0, %s12, %s10
  $region1: #{tpu_custom_call.1} parent=0
    #allocation2 [shape = 'u8[8192]{0}', space=vmem, size = 0x2000, scoped, tag = 'output window, operand 0, single buffered']
    #allocation3 [shape = 's32[1]{0}', space=sflag, size = 0x4, scoped, tag = 'scoped memory for tpu_custom_call.1']
    %14 = vsyncpa [#allocation3], 0
    // Predicated region
    $region2: #{tpu_custom_call.1} parent=1 // pred_check
      _
    $region3: #{tpu_custom_call.1} parent=1 // pred_check_branch
      %16 = sbr.rel (0) target = $region5
    $region4: #{tpu_custom_call.1} parent=1 // pred_region
      _
    $region5: #{tpu_custom_call.1} parent=1 // pred_fallthru
      _
    // Predicated region
    $region6: #{tpu_custom_call.1} parent=1 // pred_check
      _
    $region7: #{tpu_custom_call.1} parent=1 // pred_check_branch
      %18 = sbr.rel (0) target = $region9
    $region8: #{tpu_custom_call.1} parent=1 // pred_region
      _
    $region9: #{tpu_custom_call.1} parent=1 // pred_fallthru
      _
    // Predicated region
    $region10: #{tpu_custom_call.1} parent=1 // pred_check
      _
    $region11: #{tpu_custom_call.1} parent=1 // pred_check_branch
      %20 = sbr.rel (0) target = $region13
    $region12: #{tpu_custom_call.1} parent=1 // pred_region
      _
    $region13: #{tpu_custom_call.1} parent=1 // pred_fallthru
      _
    // Predicated region
    $region14: #{tpu_custom_call.1} parent=1 // pred_check
      _
    $region15: #{tpu_custom_call.1} parent=1 // pred_check_branch
      %22 = sbr.rel (0) target = $region17
    $region16: #{tpu_custom_call.1} parent=1 // pred_region
      _
    $region17: #{tpu_custom_call.1} parent=1 // pred_fallthru
      _
    // Predicated region
    $region18: #{tpu_custom_call.1} parent=1 // pred_check
      _
    $region19: #{tpu_custom_call.1} parent=1 // pred_check_branch
      %24 = sbr.rel (0) target = $region21
    $region20: #{tpu_custom_call.1} parent=1 // pred_region
      _
    $region21: #{tpu_custom_call.1} parent=1 // pred_fallthru
      _
    // Predicated region
    $region22: #{tpu_custom_call.1} parent=1 // pred_check
      _
    $region23: #{tpu_custom_call.1} parent=1 // pred_check_branch
      %26 = sbr.rel (0) target = $region25
    $region24: #{tpu_custom_call.1} parent=1 // pred_region
      _
    $region25: #{tpu_custom_call.1} parent=1 // pred_fallthru
      _
    // Predicated region
    $region26: #{tpu_custom_call.1} parent=1 // pred_check
      _
    $region27: #{tpu_custom_call.1} parent=1 // pred_check_branch
      %28 = sbr.rel (0) target = $region29
    $region28: #{tpu_custom_call.1} parent=1 // pred_region
      _
    $region29: #{tpu_custom_call.1} parent=1 // pred_fallthru
      _
    // Predicated region
    $region30: #{tpu_custom_call.1} parent=1 // pred_check
      _
    $region31: #{tpu_custom_call.1} parent=1 // pred_check_branch
      %30 = sbr.rel (0) target = $region33
    $region32: #{tpu_custom_call.1} parent=1 // pred_region
      _
    $region33: #{tpu_custom_call.1} parent=1 // pred_fallthru
      _
    // Predicated region
    $region34: #{tpu_custom_call.1} parent=1 // pred_check
      _
    $region35: #{tpu_custom_call.1} parent=1 // pred_check_branch
      %32 = sbr.rel (0) target = $region37
    $region36: #{tpu_custom_call.1} parent=1 // pred_region
      _
    $region37: #{tpu_custom_call.1} parent=1 // pred_fallthru
      _
    %v34 = vld [vmem:[%s0] sm:$0xf]
    %v35 = vld [vmem:[%s0 + $0x4] sm:$0xf]
    %v36 = vld [vmem:[%s0 + $0x8] sm:$0xf]
    %v37 = vld [vmem:[%s0 + $0xc] sm:$0xf]
    %v38 = vld [vmem:[%s0 + $0x10] sm:$0xf]
    %v39 = vld [vmem:[%s0 + $0x14] sm:$0xf]
    %v40 = vld [vmem:[%s0 + $0x18] sm:$0xf]
    %v41 = vld [vmem:[%s0 + $0x1c] sm:$0xf]
    %v42 = vld [vmem:[%s0 + $0x20] sm:$0xf]
    %v43 = vld [vmem:[%s0 + $0x24] sm:$0xf]
    %v44 = vld [vmem:[%s0 + $0x28] sm:$0xf]
    %v45 = vld [vmem:[%s0 + $0x2c] sm:$0xf]
    %v46 = vld [vmem:[%s0 + $0x30] sm:$0xf]
    %v47 = vld [vmem:[%s0 + $0x34] sm:$0xf]
    %v48 = vld [vmem:[%s0 + $0x38] sm:$0xf]
    %v49 = vld [vmem:[%s0 + $0x3c] sm:$0xf]
    %v50 = vld [vmem:[%s1] sm:$0xf]
    %v51 = vld [vmem:[%s1 + $0x4] sm:$0xf]
    %v52 = vld [vmem:[%s1 + $0x8] sm:$0xf]
    %v53 = vld [vmem:[%s1 + $0xc] sm:$0xf]
    %v54 = vld [vmem:[%s1 + $0x10] sm:$0xf]
    %v55 = vld [vmem:[%s1 + $0x14] sm:$0xf]
    %v56 = vld [vmem:[%s1 + $0x18] sm:$0xf]
    %v57 = vld [vmem:[%s1 + $0x1c] sm:$0xf]
    %v58 = vld [vmem:[%s1 + $0x20] sm:$0xf]
    %v59 = vld [vmem:[%s1 + $0x24] sm:$0xf]
    %v60 = vld [vmem:[%s1 + $0x28] sm:$0xf]
    %v61 = vld [vmem:[%s1 + $0x2c] sm:$0xf]
    %v62 = vld [vmem:[%s1 + $0x30] sm:$0xf]
    %v63 = vld [vmem:[%s1 + $0x34] sm:$0xf]
    %v64 = vld [vmem:[%s1 + $0x38] sm:$0xf]
    %v65 = vld [vmem:[%s1 + $0x3c] sm:$0xf]
    %v66 = vld [vmem:[%s1 + $0x40] sm:$0xf]
    %v67 = vld [vmem:[%s1 + $0x44] sm:$0xf]
    %v68 = vld [vmem:[%s1 + $0x48] sm:$0xf]
    %v69 = vld [vmem:[%s1 + $0x4c] sm:$0xf]
    %v70 = vld [vmem:[%s1 + $0x50] sm:$0xf]
    %v71 = vld [vmem:[%s1 + $0x54] sm:$0xf]
    %v72 = vld [vmem:[%s1 + $0x58] sm:$0xf]
    %v73 = vld [vmem:[%s1 + $0x5c] sm:$0xf]
    %v74 = vld [vmem:[%s1 + $0x60] sm:$0xf]
    %v75 = vld [vmem:[%s1 + $0x64] sm:$0xf]
    %v76 = vld [vmem:[%s1 + $0x68] sm:$0xf]
    %v77 = vld [vmem:[%s1 + $0x6c] sm:$0xf]
    %v78 = vld [vmem:[%s1 + $0x70] sm:$0xf]
    %v79 = vld [vmem:[%s1 + $0x74] sm:$0xf]
    %v80 = vld [vmem:[%s1 + $0x78] sm:$0xf]
    %v81 = vld [vmem:[%s1 + $0x7c] sm:$0xf]
    %v82 = vld [vmem:[%s2] sm:$0xff]
    %v83 = vld [vmem:[%s2 + $0x8] sm:$0xff]
    %v84 = vld [vmem:[%s2 + $0x10] sm:$0xff]
    %v85 = vld [vmem:[%s2 + $0x18] sm:$0xff]
    %v86 = vld [vmem:[%s2 + $0x20] sm:$0xff]
    %v87 = vld [vmem:[%s2 + $0x28] sm:$0xff]
    %v88 = vld [vmem:[%s2 + $0x30] sm:$0xff]
    %v89 = vld [vmem:[%s2 + $0x38] sm:$0xff]
    %v90 = vld [vmem:[%s2 + $0x40] sm:$0xff]
    %v91 = vld [vmem:[%s2 + $0x48] sm:$0xff]
    %v92 = vld [vmem:[%s2 + $0x50] sm:$0xff]
    %v93 = vld [vmem:[%s2 + $0x58] sm:$0xff]
    %v94 = vld [vmem:[%s2 + $0x60] sm:$0xff]
    %v95 = vld [vmem:[%s2 + $0x68] sm:$0xff]
    %v96 = vld [vmem:[%s2 + $0x70] sm:$0xff]
    %v97 = vld [vmem:[%s2 + $0x78] sm:$0xff]
    %v98 = vld [vmem:[%s2 + $0x80] sm:$0xff]
    %v99 = vld [vmem:[%s2 + $0x88] sm:$0xff]
    %v100 = vld [vmem:[%s2 + $0x90] sm:$0xff]
    %v101 = vld [vmem:[%s2 + $0x98] sm:$0xff]
    %v102 = vld [vmem:[%s2 + $0xa0] sm:$0xff]
    %v103 = vld [vmem:[%s2 + $0xa8] sm:$0xff]
    %v104 = vld [vmem:[%s2 + $0xb0] sm:$0xff]
    %v105 = vld [vmem:[%s2 + $0xb8] sm:$0xff]
    %v106 = vld [vmem:[%s2 + $0xc0] sm:$0xff]
    %v107 = vld [vmem:[%s2 + $0xc8] sm:$0xff]
    %v108 = vld [vmem:[%s2 + $0xd0] sm:$0xff]
    %v109 = vld [vmem:[%s2 + $0xd8] sm:$0xff]
    %v110 = vld [vmem:[%s2 + $0xe0] sm:$0xff]
    %v111 = vld [vmem:[%s2 + $0xe8] sm:$0xff]
    %v112 = vld [vmem:[%s2 + $0xf0] sm:$0xff]
    %v113 = vld [vmem:[%s2 + $0xf8] sm:$0xff]
    %115 = vset.pattern.permute.xlu0 0
    %116 = vperm.xlu0 %115, %v82
    %v117 = vpop.permute.xlu0 %116
    %120 = vset.pattern.permute.xlu0 0
    %121 = vperm.xlu0 %120, %v83
    %v122 = vpop.permute.xlu0 %121
    %125 = vset.pattern.permute.xlu0 0
    %126 = vperm.xlu0 %125, %v84
    %v127 = vpop.permute.xlu0 %126
    %130 = vset.pattern.permute.xlu0 0
    %131 = vperm.xlu0 %130, %v85
    %v132 = vpop.permute.xlu0 %131
    %135 = vset.pattern.permute.xlu0 0
    %136 = vperm.xlu0 %135, %v86
    %v137 = vpop.permute.xlu0 %136
    %140 = vset.pattern.permute.xlu0 0
    %141 = vperm.xlu0 %140, %v87
    %v142 = vpop.permute.xlu0 %141
    %145 = vset.pattern.permute.xlu0 0
    %146 = vperm.xlu0 %145, %v88
    %v147 = vpop.permute.xlu0 %146
    %150 = vset.pattern.permute.xlu0 0
    %151 = vperm.xlu0 %150, %v89
    %v152 = vpop.permute.xlu0 %151
    %155 = vset.pattern.permute.xlu0 0
    %156 = vperm.xlu0 %155, %v90
    %v157 = vpop.permute.xlu0 %156
    %160 = vset.pattern.permute.xlu0 0
    %161 = vperm.xlu0 %160, %v91
    %v162 = vpop.permute.xlu0 %161
    %165 = vset.pattern.permute.xlu0 0
    %166 = vperm.xlu0 %165, %v92
    %v167 = vpop.permute.xlu0 %166
    %170 = vset.pattern.permute.xlu0 0
    %171 = vperm.xlu0 %170, %v93
    %v172 = vpop.permute.xlu0 %171
    %175 = vset.pattern.permute.xlu0 0
    %176 = vperm.xlu0 %175, %v94
    %v177 = vpop.permute.xlu0 %176
    %180 = vset.pattern.permute.xlu0 0
    %181 = vperm.xlu0 %180, %v95
    %v182 = vpop.permute.xlu0 %181
    %185 = vset.pattern.permute.xlu0 0
    %186 = vperm.xlu0 %185, %v96
    %v187 = vpop.permute.xlu0 %186
    %190 = vset.pattern.permute.xlu0 0
    %191 = vperm.xlu0 %190, %v97
    %v192 = vpop.permute.xlu0 %191
    %195 = vset.pattern.permute.xlu0 0
    %196 = vperm.xlu0 %195, %v98
    %v197 = vpop.permute.xlu0 %196
    %200 = vset.pattern.permute.xlu0 0
    %201 = vperm.xlu0 %200, %v99
    %v202 = vpop.permute.xlu0 %201
    %205 = vset.pattern.permute.xlu0 0
    %206 = vperm.xlu0 %205, %v100
    %v207 = vpop.permute.xlu0 %206
    %210 = vset.pattern.permute.xlu0 0
    %211 = vperm.xlu0 %210, %v101
    %v212 = vpop.permute.xlu0 %211
    %215 = vset.pattern.permute.xlu0 0
    %216 = vperm.xlu0 %215, %v102
    %v217 = vpop.permute.xlu0 %216
    %220 = vset.pattern.permute.xlu0 0
    %221 = vperm.xlu0 %220, %v103
    %v222 = vpop.permute.xlu0 %221
    %225 = vset.pattern.permute.xlu0 0
    %226 = vperm.xlu0 %225, %v104
    %v227 = vpop.permute.xlu0 %226
    %230 = vset.pattern.permute.xlu0 0
    %231 = vperm.xlu0 %230, %v105
    %v232 = vpop.permute.xlu0 %231
    %235 = vset.pattern.permute.xlu0 0
    %236 = vperm.xlu0 %235, %v106
    %v237 = vpop.permute.xlu0 %236
    %240 = vset.pattern.permute.xlu0 0
    %241 = vperm.xlu0 %240, %v107
    %v242 = vpop.permute.xlu0 %241
    %245 = vset.pattern.permute.xlu0 0
    %246 = vperm.xlu0 %245, %v108
    %v247 = vpop.permute.xlu0 %246
    %250 = vset.pattern.permute.xlu0 0
    %251 = vperm.xlu0 %250, %v109
    %v252 = vpop.permute.xlu0 %251
    %255 = vset.pattern.permute.xlu0 0
    %256 = vperm.xlu0 %255, %v110
    %v257 = vpop.permute.xlu0 %256
    %260 = vset.pattern.permute.xlu0 0
    %261 = vperm.xlu0 %260, %v111
    %v262 = vpop.permute.xlu0 %261
    %265 = vset.pattern.permute.xlu0 0
    %266 = vperm.xlu0 %265, %v112
    %v267 = vpop.permute.xlu0 %266
    %270 = vset.pattern.permute.xlu0 0
    %271 = vperm.xlu0 %270, %v113
    %v272 = vpop.permute.xlu0 %271
    %v306 = vunpack.c.l.b16 %v50
    %v307 = vunpack.c.l.b16 %v51
    %v308 = vunpack.c.l.b16 %v52
    %v309 = vunpack.c.l.b16 %v53
    %v310 = vunpack.c.l.b16 %v54
    %v311 = vunpack.c.l.b16 %v55
    %v312 = vunpack.c.l.b16 %v56
    %v313 = vunpack.c.l.b16 %v57
    %v314 = vunpack.c.l.b16 %v58
    %v315 = vunpack.c.l.b16 %v59
    %v316 = vunpack.c.l.b16 %v60
    %v317 = vunpack.c.l.b16 %v61
    %v318 = vunpack.c.l.b16 %v62
    %v319 = vunpack.c.l.b16 %v63
    %v320 = vunpack.c.l.b16 %v64
    %v321 = vunpack.c.l.b16 %v65
    %v322 = vunpack.c.l.b16 %v66
    %v323 = vunpack.c.l.b16 %v67
    %v324 = vunpack.c.l.b16 %v68
    %v325 = vunpack.c.l.b16 %v69
    %v326 = vunpack.c.l.b16 %v70
    %v327 = vunpack.c.l.b16 %v71
    %v328 = vunpack.c.l.b16 %v72
    %v329 = vunpack.c.l.b16 %v73
    %v330 = vunpack.c.l.b16 %v74
    %v331 = vunpack.c.l.b16 %v75
    %v332 = vunpack.c.l.b16 %v76
    %v333 = vunpack.c.l.b16 %v77
    %v334 = vunpack.c.l.b16 %v78
    %v335 = vunpack.c.l.b16 %v79
    %v336 = vunpack.c.l.b16 %v80
    %v337 = vunpack.c.l.b16 %v81
    %v338 = vpack.c.b16 %v307, %v306
    %v339 = vpack.c.b16 %v309, %v308
    %v340 = vpack.c.b16 %v311, %v310
    %v341 = vpack.c.b16 %v313, %v312
    %v342 = vpack.c.b16 %v315, %v314
    %v343 = vpack.c.b16 %v317, %v316
    %v344 = vpack.c.b16 %v319, %v318
    %v345 = vpack.c.b16 %v321, %v320
    %v346 = vpack.c.b16 %v323, %v322
    %v347 = vpack.c.b16 %v325, %v324
    %v348 = vpack.c.b16 %v327, %v326
    %v349 = vpack.c.b16 %v329, %v328
    %v350 = vpack.c.b16 %v331, %v330
    %v351 = vpack.c.b16 %v333, %v332
    %v352 = vpack.c.b16 %v335, %v334
    %v353 = vpack.c.b16 %v337, %v336
    %v370 = vunpack.c.l.b16 %v34
    %v371 = vunpack.c.l.b16 %v35
    %v372 = vunpack.c.l.b16 %v36
    %v373 = vunpack.c.l.b16 %v37
    %v374 = vunpack.c.l.b16 %v38
    %v375 = vunpack.c.l.b16 %v39
    %v376 = vunpack.c.l.b16 %v40
    %v377 = vunpack.c.l.b16 %v41
    %v378 = vunpack.c.l.b16 %v42
    %v379 = vunpack.c.l.b16 %v43
    %v380 = vunpack.c.l.b16 %v44
    %v381 = vunpack.c.l.b16 %v45
    %v382 = vunpack.c.l.b16 %v46
    %v383 = vunpack.c.l.b16 %v47
    %v384 = vunpack.c.l.b16 %v48
    %v385 = vunpack.c.l.b16 %v49
    %v386 = vpack.c.b16 %v371, %v370
    %v387 = vpack.c.b16 %v373, %v372
    %v388 = vpack.c.b16 %v375, %v374
    %v389 = vpack.c.b16 %v377, %v376
    %v390 = vpack.c.b16 %v379, %v378
    %v391 = vpack.c.b16 %v381, %v380
    %v392 = vpack.c.b16 %v383, %v382
    %v393 = vpack.c.b16 %v385, %v384
    %vm394 = vcmask 80896
    %v396 = vsel %vm394, %v338, 0
    %v399 = vsel %vm394, %v339, 0
    %v402 = vsel %vm394, %v340, 0
    %v405 = vsel %vm394, %v341, 0
    %v408 = vsel %vm394, %v342, 0
    %v411 = vsel %vm394, %v343, 0
    %v414 = vsel %vm394, %v344, 0
    %v417 = vsel %vm394, %v345, 0
    %v420 = vsel %vm394, %v346, 0
    %v423 = vsel %vm394, %v347, 0
    %v426 = vsel %vm394, %v348, 0
    %v429 = vsel %vm394, %v349, 0
    %v432 = vsel %vm394, %v350, 0
    %v435 = vsel %vm394, %v351, 0
    %v438 = vsel %vm394, %v352, 0
    %v441 = vsel %vm394, %v353, 0
    %v444 = vsel %vm394, %v386, 0
    %v447 = vsel %vm394, %v387, 0
    %v450 = vsel %vm394, %v388, 0
    %v453 = vsel %vm394, %v389, 0
    %v456 = vsel %vm394, %v390, 0
    %v459 = vsel %vm394, %v391, 0
    %v462 = vsel %vm394, %v392, 0
    %v465 = vsel %vm394, %v393, 0
    %467 = vmatprep.subr.bf16.mxu0 0
    %468 = vmatpush1.bf16.xpose.msra.mxu0 %v444
    %469 = vmatprep.subr.bf16.mxu0 0
    %470 = vmatpush1.bf16.xpose.msra.mxu0 %v447
    %471 = vmatprep.subr.bf16.mxu0 0
    %472 = vmatpush1.bf16.xpose.msra.mxu0 %v450
    %473 = vmatprep.subr.bf16.mxu0 0
    %474 = vmatpush1.bf16.xpose.msra.mxu0 %v453
    %475 = vmatprep.subr.bf16.mxu0 0
    %476 = vmatpush1.bf16.xpose.msra.mxu0 %v456
    %477 = vmatprep.subr.bf16.mxu0 0
    %478 = vmatpush1.bf16.xpose.msra.mxu0 %v459
    %479 = vmatprep.subr.bf16.mxu0 0
    %480 = vmatpush1.bf16.xpose.msra.mxu0 %v462
    %481 = vmatprep.subr.bf16.mxu0 0
    %482 = vmatpush1.bf16.xpose.msra.mxu0 %v465
    %483 = vmatprep.subr.bf16.mxu0 0
    %484 = vmatpush1.bf16.xpose.msra.mxu0 0
    %485 = vmatprep.subr.bf16.mxu0 0
    %486 = vmatpush1.bf16.xpose.msra.mxu0 0
    %487 = vmatprep.subr.bf16.mxu0 0
    %488 = vmatpush1.bf16.xpose.msra.mxu0 0
    %489 = vmatprep.subr.bf16.mxu0 0
    %490 = vmatpush1.bf16.xpose.msra.mxu0 0
    %491 = vmatprep.subr.bf16.mxu0 0
    %492 = vmatpush1.bf16.xpose.msra.mxu0 0
    %493 = vmatprep.subr.bf16.mxu0 0
    %494 = vmatpush1.bf16.xpose.msra.mxu0 0
    %495 = vmatprep.subr.bf16.mxu0 0
    %496 = vmatpush1.bf16.xpose.msra.mxu0 0
    %497 = vmatprep.subr.bf16.mxu0 0
    %498 = vmatpush1.bf16.xpose.msra.mxu0 0
    %499 = vmatprep.mubr.bf16.mxu0 0
    %500 = vmatmul.mubr.bf16.gmra.mrb[0].mxu0 %v396
    %v501 = vpop.f32.mrb[0].mxu0
    %v502 = vadd.f32 %v117, %v501
    %v503 = vpop.f32.mrb[0].mxu0
    %v504 = vpop.f32.mrb[0].mxu0
    %v505 = vadd.f32 %v122, %v504
    %v506 = vpop.f32.mrb[0].mxu0
    %507 = vmatprep.mubr.bf16.mxu0 0
    %508 = vmatmul.mubr.bf16.gmra.mrb[0].mxu0 %v399
    %v509 = vpop.f32.mrb[0].mxu0
    %v510 = vadd.f32 %v127, %v509
    %v511 = vpop.f32.mrb[0].mxu0
    %v512 = vpop.f32.mrb[0].mxu0
    %v513 = vadd.f32 %v132, %v512
    %v514 = vpop.f32.mrb[0].mxu0
    %515 = vmatprep.mubr.bf16.mxu0 0
    %516 = vmatmul.mubr.bf16.gmra.mrb[0].mxu0 %v402
    %v517 = vpop.f32.mrb[0].mxu0
    %v518 = vadd.f32 %v137, %v517
    %v519 = vpop.f32.mrb[0].mxu0
    %v520 = vpop.f32.mrb[0].mxu0
    %v521 = vadd.f32 %v142, %v520
    %v522 = vpop.f32.mrb[0].mxu0
    %523 = vmatprep.mubr.bf16.mxu0 0
    %524 = vmatmul.mubr.bf16.gmra.mrb[0].mxu0 %v405
    %v525 = vpop.f32.mrb[0].mxu0
    %v526 = vadd.f32 %v147, %v525
    %v527 = vpop.f32.mrb[0].mxu0
    %v528 = vpop.f32.mrb[0].mxu0
    %v529 = vadd.f32 %v152, %v528
    %v530 = vpop.f32.mrb[0].mxu0
    %531 = vmatprep.mubr.bf16.mxu0 0
    %532 = vmatmul.mubr.bf16.gmra.mrb[0].mxu0 %v408
    %v533 = vpop.f32.mrb[0].mxu0
    %v534 = vadd.f32 %v157, %v533
    %v535 = vpop.f32.mrb[0].mxu0
    %v536 = vpop.f32.mrb[0].mxu0
    %v537 = vadd.f32 %v162, %v536
    %v538 = vpop.f32.mrb[0].mxu0
    %539 = vmatprep.mubr.bf16.mxu0 0
    %540 = vmatmul.mubr.bf16.gmra.mrb[0].mxu0 %v411
    %v541 = vpop.f32.mrb[0].mxu0
    %v542 = vadd.f32 %v167, %v541
    %v543 = vpop.f32.mrb[0].mxu0
    %v544 = vpop.f32.mrb[0].mxu0
    %v545 = vadd.f32 %v172, %v544
    %v546 = vpop.f32.mrb[0].mxu0
    %547 = vmatprep.mubr.bf16.mxu0 0
    %548 = vmatmul.mubr.bf16.gmra.mrb[0].mxu0 %v414
    %v549 = vpop.f32.mrb[0].mxu0
    %v550 = vadd.f32 %v177, %v549
    %v551 = vpop.f32.mrb[0].mxu0
    %v552 = vpop.f32.mrb[0].mxu0
    %v553 = vadd.f32 %v182, %v552
    %v554 = vpop.f32.mrb[0].mxu0
    %555 = vmatprep.mubr.bf16.mxu0 0
    %556 = vmatmul.mubr.bf16.gmra.mrb[0].mxu0 %v417
    %v557 = vpop.f32.mrb[0].mxu0
    %v558 = vadd.f32 %v187, %v557
    %v559 = vpop.f32.mrb[0].mxu0
    %v560 = vpop.f32.mrb[0].mxu0
    %v561 = vadd.f32 %v192, %v560
    %v562 = vpop.f32.mrb[0].mxu0
    %563 = vmatprep.mubr.bf16.mxu0 0
    %564 = vmatmul.mubr.bf16.gmra.mrb[0].mxu0 %v420
    %v565 = vpop.f32.mrb[0].mxu0
    %v566 = vadd.f32 %v197, %v565
    %v567 = vpop.f32.mrb[0].mxu0
    %v568 = vpop.f32.mrb[0].mxu0
    %v569 = vadd.f32 %v202, %v568
    %v570 = vpop.f32.mrb[0].mxu0
    %571 = vmatprep.mubr.bf16.mxu0 0
    %572 = vmatmul.mubr.bf16.gmra.mrb[0].mxu0 %v423
    %v573 = vpop.f32.mrb[0].mxu0
    %v574 = vadd.f32 %v207, %v573
    %v575 = vpop.f32.mrb[0].mxu0
    %v576 = vpop.f32.mrb[0].mxu0
    %v577 = vadd.f32 %v212, %v576
    %v578 = vpop.f32.mrb[0].mxu0
    %579 = vmatprep.mubr.bf16.mxu0 0
    %580 = vmatmul.mubr.bf16.gmra.mrb[0].mxu0 %v426
    %v581 = vpop.f32.mrb[0].mxu0
    %v582 = vadd.f32 %v217, %v581
    %v583 = vpop.f32.mrb[0].mxu0
    %v584 = vpop.f32.mrb[0].mxu0
    %v585 = vadd.f32 %v222, %v584
    %v586 = vpop.f32.mrb[0].mxu0
    %587 = vmatprep.mubr.bf16.mxu0 0
    %588 = vmatmul.mubr.bf16.gmra.mrb[0].mxu0 %v429
    %v589 = vpop.f32.mrb[0].mxu0
    %v590 = vadd.f32 %v227, %v589
    %v591 = vpop.f32.mrb[0].mxu0
    %v592 = vpop.f32.mrb[0].mxu0
    %v593 = vadd.f32 %v232, %v592
    %v594 = vpop.f32.mrb[0].mxu0
    %595 = vmatprep.mubr.bf16.mxu0 0
    %596 = vmatmul.mubr.bf16.gmra.mrb[0].mxu0 %v432
    %v597 = vpop.f32.mrb[0].mxu0
    %v598 = vadd.f32 %v237, %v597
    %v599 = vpop.f32.mrb[0].mxu0
    %v600 = vpop.f32.mrb[0].mxu0
    %v601 = vadd.f32 %v242, %v600
    %v602 = vpop.f32.mrb[0].mxu0
    %603 = vmatprep.mubr.bf16.mxu0 0
    %604 = vmatmul.mubr.bf16.gmra.mrb[0].mxu0 %v435
    %v605 = vpop.f32.mrb[0].mxu0
    %v606 = vadd.f32 %v247, %v605
    %v607 = vpop.f32.mrb[0].mxu0
    %v608 = vpop.f32.mrb[0].mxu0
    %v609 = vadd.f32 %v252, %v608
    %v610 = vpop.f32.mrb[0].mxu0
    %611 = vmatprep.mubr.bf16.mxu0 0
    %612 = vmatmul.mubr.bf16.gmra.mrb[0].mxu0 %v438
    %v613 = vpop.f32.mrb[0].mxu0
    %v614 = vadd.f32 %v257, %v613
    %v615 = vpop.f32.mrb[0].mxu0
    %v616 = vpop.f32.mrb[0].mxu0
    %v617 = vadd.f32 %v262, %v616
    %v618 = vpop.f32.mrb[0].mxu0
    %619 = vmatprep.mubr.bf16.mxu0 0
    %620 = vmatmul.mubr.bf16.gmra.mrb[0].mxu0 %v441
    %v621 = vpop.f32.mrb[0].mxu0
    %v622 = vadd.f32 %v267, %v621
    %v623 = vpop.f32.mrb[0].mxu0
    %v624 = vpop.f32.mrb[0].mxu0
    %v625 = vadd.f32 %v272, %v624
    %v626 = vpop.f32.mrb[0].mxu0
    %627 = vdwg.mxu0
    %v628 = vmax.f32 %v502, 0.0
    %v629 = vmax.f32 %v505, 0.0
    %v630 = vmax.f32 %v510, 0.0
    %v631 = vmax.f32 %v513, 0.0
    %v632 = vmax.f32 %v518, 0.0
    %v633 = vmax.f32 %v521, 0.0
    %v634 = vmax.f32 %v526, 0.0
    %v635 = vmax.f32 %v529, 0.0
    %v636 = vmax.f32 %v534, 0.0
    %v637 = vmax.f32 %v537, 0.0
    %v638 = vmax.f32 %v542, 0.0
    %v639 = vmax.f32 %v545, 0.0
    %v640 = vmax.f32 %v550, 0.0
    %v641 = vmax.f32 %v553, 0.0
    %v642 = vmax.f32 %v558, 0.0
    %v643 = vmax.f32 %v561, 0.0
    %v644 = vmax.f32 %v566, 0.0
    %v645 = vmax.f32 %v569, 0.0
    %v646 = vmax.f32 %v574, 0.0
    %v647 = vmax.f32 %v577, 0.0
    %v648 = vmax.f32 %v582, 0.0
    %v649 = vmax.f32 %v585, 0.0
    %v650 = vmax.f32 %v590, 0.0
    %v651 = vmax.f32 %v593, 0.0
    %v652 = vmax.f32 %v598, 0.0
    %v653 = vmax.f32 %v601, 0.0
    %v654 = vmax.f32 %v606, 0.0
    %v655 = vmax.f32 %v609, 0.0
    %v656 = vmax.f32 %v614, 0.0
    %v657 = vmax.f32 %v617, 0.0
    %v658 = vmax.f32 %v622, 0.0
    %v659 = vmax.f32 %v625, 0.0
    %v660 = vpack.c.bf16 %v629, %v628
    %v661 = vpack.c.bf16 %v631, %v630
    %v662 = vpack.c.bf16 %v633, %v632
    %v663 = vpack.c.bf16 %v635, %v634
    %v664 = vpack.c.bf16 %v637, %v636
    %v665 = vpack.c.bf16 %v639, %v638
    %v666 = vpack.c.bf16 %v641, %v640
    %v667 = vpack.c.bf16 %v643, %v642
    %v668 = vpack.c.bf16 %v645, %v644
    %v669 = vpack.c.bf16 %v647, %v646
    %v670 = vpack.c.bf16 %v649, %v648
    %v671 = vpack.c.bf16 %v651, %v650
    %v672 = vpack.c.bf16 %v653, %v652
    %v673 = vpack.c.bf16 %v655, %v654
    %v674 = vpack.c.bf16 %v657, %v656
    %v675 = vpack.c.bf16 %v659, %v658
    %v676 = vld [vmem:[%s3] sm:$0xff]
    %v677 = vld [vmem:[%s3 + $0x8] sm:$0xff]
    %v678 = vld [vmem:[%s3 + $0x10] sm:$0xff]
    %v679 = vld [vmem:[%s3 + $0x18] sm:$0xff]
    %v680 = vld [vmem:[%s3 + $0x20] sm:$0xff]
    %v681 = vld [vmem:[%s3 + $0x28] sm:$0xff]
    %v682 = vld [vmem:[%s3 + $0x30] sm:$0xff]
    %v683 = vld [vmem:[%s3 + $0x38] sm:$0xff]
    %v684 = vld [vmem:[%s4] sm:$0xff]
    %v685 = vld [vmem:[%s4 + $0x8] sm:$0xff]
    %v686 = vld [vmem:[%s4 + $0x10] sm:$0xff]
    %v687 = vld [vmem:[%s4 + $0x18] sm:$0xff]
    %v688 = vld [vmem:[%s4 + $0x20] sm:$0xff]
    %v689 = vld [vmem:[%s4 + $0x28] sm:$0xff]
    %v690 = vld [vmem:[%s4 + $0x30] sm:$0xff]
    %v691 = vld [vmem:[%s4 + $0x38] sm:$0xff]
    %693 = vset.pattern.permute.xlu0 0
    %694 = vperm.xlu0 %693, %v684
    %v695 = vpop.permute.xlu0 %694
    %698 = vset.pattern.permute.xlu0 0
    %699 = vperm.xlu0 %698, %v685
    %v700 = vpop.permute.xlu0 %699
    %703 = vset.pattern.permute.xlu0 0
    %704 = vperm.xlu0 %703, %v686
    %v705 = vpop.permute.xlu0 %704
    %708 = vset.pattern.permute.xlu0 0
    %709 = vperm.xlu0 %708, %v687
    %v710 = vpop.permute.xlu0 %709
    %713 = vset.pattern.permute.xlu0 0
    %714 = vperm.xlu0 %713, %v688
    %v715 = vpop.permute.xlu0 %714
    %718 = vset.pattern.permute.xlu0 0
    %719 = vperm.xlu0 %718, %v689
    %v720 = vpop.permute.xlu0 %719
    %723 = vset.pattern.permute.xlu0 0
    %724 = vperm.xlu0 %723, %v690
    %v725 = vpop.permute.xlu0 %724
    %728 = vset.pattern.permute.xlu0 0
    %729 = vperm.xlu0 %728, %v691
    %v730 = vpop.permute.xlu0 %729
    %v740 = vunpack.c.l.b16 %v676
    %v741 = vunpack.c.h.b16 %v676
    %v742 = vunpack.c.l.b16 %v677
    %v743 = vunpack.c.h.b16 %v677
    %v744 = vunpack.c.l.b16 %v678
    %v745 = vunpack.c.h.b16 %v678
    %v746 = vunpack.c.l.b16 %v679
    %v747 = vunpack.c.h.b16 %v679
    %v748 = vunpack.c.l.b16 %v680
    %v749 = vunpack.c.h.b16 %v680
    %v750 = vunpack.c.l.b16 %v681
    %v751 = vunpack.c.h.b16 %v681
    %v752 = vunpack.c.l.b16 %v682
    %v753 = vunpack.c.h.b16 %v682
    %v754 = vunpack.c.l.b16 %v683
    %v755 = vunpack.c.h.b16 %v683
    %v756 = vpack.c.b16 %v742, %v740
    %v757 = vpack.c.b16 %v743, %v741
    %v758 = vpack.c.b16 %v746, %v744
    %v759 = vpack.c.b16 %v747, %v745
    %v760 = vpack.c.b16 %v750, %v748
    %v761 = vpack.c.b16 %v751, %v749
    %v762 = vpack.c.b16 %v754, %v752
    %v763 = vpack.c.b16 %v755, %v753
    %772 = vmatprep.subr.bf16.mxu0 0
    %773 = vmatpush1.bf16.msra.mxu0 %v660
    %774 = vmatprep.subr.bf16.mxu0 0
    %775 = vmatpush1.bf16.msra.mxu0 %v661
    %776 = vmatprep.subr.bf16.mxu0 0
    %777 = vmatpush1.bf16.msra.mxu0 %v662
    %778 = vmatprep.subr.bf16.mxu0 0
    %779 = vmatpush1.bf16.msra.mxu0 %v663
    %780 = vmatprep.subr.bf16.mxu0 0
    %781 = vmatpush1.bf16.msra.mxu0 %v664
    %782 = vmatprep.subr.bf16.mxu0 0
    %783 = vmatpush1.bf16.msra.mxu0 %v665
    %784 = vmatprep.subr.bf16.mxu0 0
    %785 = vmatpush1.bf16.msra.mxu0 %v666
    %786 = vmatprep.subr.bf16.mxu0 0
    %787 = vmatpush1.bf16.msra.mxu0 %v667
    %788 = vmatprep.subr.bf16.mxu0 0
    %789 = vmatpush1.bf16.msra.mxu0 %v668
    %790 = vmatprep.subr.bf16.mxu0 0
    %791 = vmatpush1.bf16.msra.mxu0 %v669
    %792 = vmatprep.subr.bf16.mxu0 0
    %793 = vmatpush1.bf16.msra.mxu0 %v670
    %794 = vmatprep.subr.bf16.mxu0 0
    %795 = vmatpush1.bf16.msra.mxu0 %v671
    %796 = vmatprep.subr.bf16.mxu0 0
    %797 = vmatpush1.bf16.msra.mxu0 %v672
    %798 = vmatprep.subr.bf16.mxu0 0
    %799 = vmatpush1.bf16.msra.mxu0 %v673
    %800 = vmatprep.subr.bf16.mxu0 0
    %801 = vmatpush1.bf16.msra.mxu0 %v674
    %802 = vmatprep.subr.bf16.mxu0 0
    %803 = vmatpush1.bf16.msra.mxu0 %v675
    %804 = vmatprep.mubr.bf16.mxu0 %v757
    %805 = vmatmul.mubr.bf16.gmra.mrb[0].mxu0 %v756
    %v806 = vpop.f32.mrb[0].mxu0
    %v807 = vadd.f32 %v695, %v806
    %v808 = vpop.f32.mrb[0].mxu0
    %v809 = vpop.f32.mrb[0].mxu0
    %v810 = vadd.f32 %v700, %v809
    %v811 = vpop.f32.mrb[0].mxu0
    %812 = vmatprep.mubr.bf16.mxu0 %v759
    %813 = vmatmul.mubr.bf16.gmra.mrb[0].mxu0 %v758
    %v814 = vpop.f32.mrb[0].mxu0
    %v815 = vadd.f32 %v705, %v814
    %v816 = vpop.f32.mrb[0].mxu0
    %v817 = vpop.f32.mrb[0].mxu0
    %v818 = vadd.f32 %v710, %v817
    %v819 = vpop.f32.mrb[0].mxu0
    %820 = vmatprep.mubr.bf16.mxu0 %v761
    %821 = vmatmul.mubr.bf16.gmra.mrb[0].mxu0 %v760
    %v822 = vpop.f32.mrb[0].mxu0
    %v823 = vadd.f32 %v715, %v822
    %v824 = vpop.f32.mrb[0].mxu0
    %v825 = vpop.f32.mrb[0].mxu0
    %v826 = vadd.f32 %v720, %v825
    %v827 = vpop.f32.mrb[0].mxu0
    %828 = vmatprep.mubr.bf16.mxu0 %v763
    %829 = vmatmul.mubr.bf16.gmra.mrb[0].mxu0 %v762
    %v830 = vpop.f32.mrb[0].mxu0
    %v831 = vadd.f32 %v725, %v830
    %v832 = vpop.f32.mrb[0].mxu0
    %v833 = vpop.f32.mrb[0].mxu0
    %v834 = vadd.f32 %v730, %v833
    %v835 = vpop.f32.mrb[0].mxu0
    %836 = vdwg.mxu0
    %v837 = vmax.f32 %v807, 0.0
    %v838 = vmax.f32 %v810, 0.0
    %v839 = vmax.f32 %v815, 0.0
    %v840 = vmax.f32 %v818, 0.0
    %v841 = vmax.f32 %v823, 0.0
    %v842 = vmax.f32 %v826, 0.0
    %v843 = vmax.f32 %v831, 0.0
    %v844 = vmax.f32 %v834, 0.0
    %v845 = vpack.c.bf16 %v838, %v837
    %v846 = vpack.c.bf16 %v840, %v839
    %v847 = vpack.c.bf16 %v842, %v841
    %v848 = vpack.c.bf16 %v844, %v843
    %v849 = vld [vmem:[%s5] sm:$0xf]
    %v850 = vld [vmem:[%s5 + $0x4] sm:$0xf]
    %v851 = vld [vmem:[%s5 + $0x8] sm:$0xf]
    %v852 = vld [vmem:[%s5 + $0xc] sm:$0xf]
    %v853 = vld [vmem:[%s6] sm:$0xff]
    %v854 = vld [vmem:[%s6 + $0x8] sm:$0xff]
    %v855 = vld [vmem:[%s6 + $0x10] sm:$0xff]
    %v856 = vld [vmem:[%s6 + $0x18] sm:$0xff]
    %858 = vset.pattern.permute.xlu0 0
    %859 = vperm.xlu0 %858, %v853
    %v860 = vpop.permute.xlu0 %859
    %863 = vset.pattern.permute.xlu0 0
    %864 = vperm.xlu0 %863, %v854
    %v865 = vpop.permute.xlu0 %864
    %868 = vset.pattern.permute.xlu0 0
    %869 = vperm.xlu0 %868, %v855
    %v870 = vpop.permute.xlu0 %869
    %873 = vset.pattern.permute.xlu0 0
    %874 = vperm.xlu0 %873, %v856
    %v875 = vpop.permute.xlu0 %874
    %v881 = vunpack.c.l.b16 %v849
    %v882 = vunpack.c.l.b16 %v850
    %v883 = vunpack.c.l.b16 %v851
    %v884 = vunpack.c.l.b16 %v852
    %v885 = vpack.c.b16 %v882, %v881
    %v886 = vpack.c.b16 %v884, %v883
    %vm887 = vcmask 523264
    %v889 = vsel %vm887, %v885, 0
    %v892 = vsel %vm887, %v886, 0
    %894 = vmatprep.subr.bf16.mxu0 0
    %895 = vmatpush1.bf16.msra.mxu0 %v845
    %896 = vmatprep.subr.bf16.mxu0 0
    %897 = vmatpush1.bf16.msra.mxu0 %v846
    %898 = vmatprep.subr.bf16.mxu0 0
    %899 = vmatpush1.bf16.msra.mxu0 %v847
    %900 = vmatprep.subr.bf16.mxu0 0
    %901 = vmatpush1.bf16.msra.mxu0 %v848
    %902 = vmatprep.subr.bf16.mxu0 0
    %903 = vmatpush1.bf16.msra.mxu0 0
    %904 = vmatprep.subr.bf16.mxu0 0
    %905 = vmatpush1.bf16.msra.mxu0 0
    %906 = vmatprep.subr.bf16.mxu0 0
    %907 = vmatpush1.bf16.msra.mxu0 0
    %908 = vmatprep.subr.bf16.mxu0 0
    %909 = vmatpush1.bf16.msra.mxu0 0
    %910 = vmatprep.subr.bf16.mxu0 0
    %911 = vmatpush1.bf16.msra.mxu0 0
    %912 = vmatprep.subr.bf16.mxu0 0
    %913 = vmatpush1.bf16.msra.mxu0 0
    %914 = vmatprep.subr.bf16.mxu0 0
    %915 = vmatpush1.bf16.msra.mxu0 0
    %916 = vmatprep.subr.bf16.mxu0 0
    %917 = vmatpush1.bf16.msra.mxu0 0
    %918 = vmatprep.subr.bf16.mxu0 0
    %919 = vmatpush1.bf16.msra.mxu0 0
    %920 = vmatprep.subr.bf16.mxu0 0
    %921 = vmatpush1.bf16.msra.mxu0 0
    %922 = vmatprep.subr.bf16.mxu0 0
    %923 = vmatpush1.bf16.msra.mxu0 0
    %924 = vmatprep.subr.bf16.mxu0 0
    %925 = vmatpush1.bf16.msra.mxu0 0
    %926 = vmatprep.mubr.bf16.mxu0 0
    %927 = vmatmul.mubr.bf16.gmra.mrb[0].mxu0 %v889
    %v928 = vpop.f32.mrb[0].mxu0
    %v929 = vadd.f32 %v860, %v928
    %v930 = vpop.f32.mrb[0].mxu0
    %v931 = vpop.f32.mrb[0].mxu0
    %v932 = vadd.f32 %v865, %v931
    %v933 = vpop.f32.mrb[0].mxu0
    %934 = vmatprep.mubr.bf16.mxu0 0
    %935 = vmatmul.mubr.bf16.gmra.mrb[0].mxu0 %v892
    %v936 = vpop.f32.mrb[0].mxu0
    %v937 = vadd.f32 %v870, %v936
    %v938 = vpop.f32.mrb[0].mxu0
    %v939 = vpop.f32.mrb[0].mxu0
    %v940 = vadd.f32 %v875, %v939
    %v941 = vpop.f32.mrb[0].mxu0
    %942 = vdwg.mxu0
    %v943 = vmax.f32 %v929, 0.0
    %v944 = vmax.f32 %v932, 0.0
    %v945 = vmax.f32 %v937, 0.0
    %v946 = vmax.f32 %v940, 0.0
    %v947 = vpack.c.bf16 %v944, %v943
    %v948 = vpack.c.bf16 %v946, %v945
    %v949 = vld [vmem:[%s7] sm:$0xf]
    %v950 = vld [vmem:[%s7 + $0x4] sm:$0x1]
    %v951 = vld [vmem:[%s8] sm:$0xff]
    %v952 = vld [vmem:[%s8 + $0x8] sm:$0x1]
    %954 = vset.pattern.permute.xlu0 0
    %955 = vperm.xlu0 %954, %v951
    %v956 = vpop.permute.xlu0 %955
    %959 = vset.pattern.permute.xlu0 0
    %960 = vperm.xlu0 %959, %v952
    %v961 = vpop.permute.xlu0 %960
    %v965 = vunpack.c.l.b16 %v949
    %v966 = vunpack.c.l.b16 %v950
    %v967 = vpack.c.b16 %v966, %v965
    %vm968 = vcmask 261120
    %v970 = vsel %vm968, %v967, 0
    %972 = vmatprep.subr.bf16.mxu0 0
    %973 = vmatpush1.bf16.msra.mxu0 %v947
    %974 = vmatprep.subr.bf16.mxu0 0
    %975 = vmatpush1.bf16.msra.mxu0 %v948
    %976 = vmatprep.subr.bf16.mxu0 0
    %977 = vmatpush1.bf16.msra.mxu0 0
    %978 = vmatprep.subr.bf16.mxu0 0
    %979 = vmatpush1.bf16.msra.mxu0 0
    %980 = vmatprep.subr.bf16.mxu0 0
    %981 = vmatpush1.bf16.msra.mxu0 0
    %982 = vmatprep.subr.bf16.mxu0 0
    %983 = vmatpush1.bf16.msra.mxu0 0
    %984 = vmatprep.subr.bf16.mxu0 0
    %985 = vmatpush1.bf16.msra.mxu0 0
    %986 = vmatprep.subr.bf16.mxu0 0
    %987 = vmatpush1.bf16.msra.mxu0 0
    %988 = vmatprep.subr.bf16.mxu0 0
    %989 = vmatpush1.bf16.msra.mxu0 0
    %990 = vmatprep.subr.bf16.mxu0 0
    %991 = vmatpush1.bf16.msra.mxu0 0
    %992 = vmatprep.subr.bf16.mxu0 0
    %993 = vmatpush1.bf16.msra.mxu0 0
    %994 = vmatprep.subr.bf16.mxu0 0
    %995 = vmatpush1.bf16.msra.mxu0 0
    %996 = vmatprep.subr.bf16.mxu0 0
    %997 = vmatpush1.bf16.msra.mxu0 0
    %998 = vmatprep.subr.bf16.mxu0 0
    %999 = vmatpush1.bf16.msra.mxu0 0
    %1000 = vmatprep.subr.bf16.mxu0 0
    %1001 = vmatpush1.bf16.msra.mxu0 0
    %1002 = vmatprep.subr.bf16.mxu0 0
    %1003 = vmatpush1.bf16.msra.mxu0 0
    %1004 = vmatprep.mubr.bf16.mxu0 0
    %1005 = vmatmul.mubr.bf16.gmra.mrb[0].mxu0 %v970
    %v1006 = vpop.f32.mrb[0].mxu0
    %v1007 = vadd.f32 %v956, %v1006
    %v1008 = vpop.f32.mrb[0].mxu0
    %v1009 = vpop.f32.mrb[0].mxu0
    %v1010 = vadd.f32 %v961, %v1009
    %v1011 = vpop.f32.mrb[0].mxu0
    %1012 = vdwg.mxu0
    %1013 = vst [vmem:[#allocation2] sm:$0xff] %v1007
    %1014 = vst [vmem:[#allocation2 + $0x8] sm:$0x1] %v1010
    // Predicated region
    $region38: #{tpu_custom_call.1} parent=1 // pred_check
      _
    $region39: #{tpu_custom_call.1} parent=1 // pred_check_branch
      %1016 = sbr.rel (0) target = $region41
    $region40: #{tpu_custom_call.1} parent=1 // pred_region
      %s1018 = ssub.s32 256, 256
      %1019 = vsyncadd [#allocation3], %s1018
      %s1020 = sshll.u32 [#allocation2], 4
      %s1021 = int_to_ptr.vmem [resolvable:$true] %s1020
      %1026 = dma.vmem_to_hbm [thread:$0]  %s1021, 256, %s9, [#allocation3], 128, 128, 8
    $region41: #{tpu_custom_call.1} parent=1 // pred_fallthru
      _
    // Predicated region
    $region42: #{tpu_custom_call.1} parent=1 // pred_check
      _
    $region43: #{tpu_custom_call.1} parent=1 // pred_check_branch
      %1028 = sbr.rel (0) target = $region45
    $region44: #{tpu_custom_call.1} parent=1 // pred_region
      %1029 = dma.done [#allocation3], 256
    $region45: #{tpu_custom_call.1} parent=1 // pred_fallthru
      _
    %1030 = vsyncpa [#allocation3], 1

</llo_original>
